<compile_context>
chip_gen: v5e
topology: v5e:2x2
jax: 0.10.0
libtpu: 0.0.40
codegen_flags: <defaults>
</compile_context>

<pallas_src>
import functools

import jax
import jax.numpy as jnp
from jax import lax
from jax.experimental import pallas as pl
from jax.experimental.pallas import tpu as pltpu  # noqa: F401  (kept for TPU-specific tuning hooks)

EPS = 1e-5


def _pick_chunk(c):
    for cand in (32, 16, 8):
        if c % cand == 0:
            return cand
    return c


def _bn_relu_kernel(x_ref, gamma_ref, beta_ref, o_ref):
    # x_ref: (C, M) with M = N*H*W.  Channels on sublanes, spatial on lanes.
    c, m = x_ref.shape
    inv_m = 1.0 / float(m)

    c_chunk = _pick_chunk(c)
    n_chunks = c // c_chunk

    def body(i, carry):
        off = pl.multiple_of(i * c_chunk, c_chunk)

        xc = x_ref[pl.ds(off, c_chunk), :].astype(jnp.float32)       # (cc, M)

        # Per-channel mean over the lane axis (full N*H*W extent).
        mean = jnp.sum(xc, axis=-1, keepdims=True) * inv_m            # (cc, 1)
        xm = xc - mean
        # Centered (two-pass) biased variance — robust to large |mean|.
        var = jnp.sum(xm * xm, axis=-1, keepdims=True) * inv_m        # (cc, 1)
        inv_std = lax.rsqrt(var + EPS)                                 # EUP slot

        g = gamma_ref[pl.ds(off, c_chunk), :].astype(jnp.float32)     # (cc, 1)
        b = beta_ref[pl.ds(off, c_chunk), :].astype(jnp.float32)      # (cc, 1)
        scale = g * inv_std

        o_ref[pl.ds(off, c_chunk), :] = jnp.maximum(
            xm * scale + b, 0.0).astype(o_ref.dtype)
        return carry

    lax.fori_loop(0, n_chunks, body, None, unroll=True)


def batchnorm_relu(x_nchw, gamma, beta):
    """x_nchw: (N, C, H, W) float32.  gamma, beta: (C,) float32."""
    n, c, h, w = x_nchw.shape
    m = n * h * w

    # Layout: (C, N*H*W).  For N=1 this is a free reshape of contiguous NCHW;
    # for N>1 XLA inserts a transpose outside the kernel (kept for generality).
    if n == 1:
        x2d = x_nchw.reshape(c, m)
    else:
        x2d = jnp.transpose(x_nchw, (1, 0, 2, 3)).reshape(c, m)

    gamma2d = gamma.reshape(c, 1)
    beta2d = beta.reshape(c, 1)

    cost = pl.CostEstimate(
        flops=6 * c * m,              # sums, centering, FMA, relu
        transcendentals=c,            # rsqrt per channel
        bytes_accessed=2 * c * m * 4 + 2 * c * 4,
    )

    out2d = pl.pallas_call(
        _bn_relu_kernel,
        out_shape=jax.ShapeDtypeStruct((c, m), x_nchw.dtype),
        grid=(1,),
        in_specs=[
            pl.BlockSpec((c, m), lambda i: (0, 0)),
            pl.BlockSpec((c, 1), lambda i: (0, 0)),
            pl.BlockSpec((c, 1), lambda i: (0, 0)),
        ],
        out_specs=pl.BlockSpec((c, m), lambda i: (0, 0)),
        cost_estimate=cost,
    )(x2d, gamma2d, beta2d)

    if n == 1:
        return out2d.reshape(n, c, h, w)
    return jnp.transpose(out2d.reshape(c, n, h, w), (1, 0, 2, 3))


def _reference(x_nchw, gamma, beta):
    # Pure-JAX reference of training-mode BatchNorm2d + ReLU (biased variance).
    mean = jnp.mean(x_nchw, axis=(0, 2, 3), keepdims=True)
    var = jnp.mean((x_nchw - mean) ** 2, axis=(0, 2, 3), keepdims=True)
    y = (x_nchw - mean) / jnp.sqrt(var + EPS)
    y = y * gamma.reshape(1, -1, 1, 1) + beta.reshape(1, -1, 1, 1)
    return jnp.maximum(y, 0.0)


if __name__ == "__main__":
    # TODO(synk): running-mean/var buffer updates (track_running_stats /
    # momentum) are omitted — they do not affect the forward output.
    N, C, H, W = 1, 160, 14, 14

    key = jax.random.PRNGKey(0)
    kx, kg, kb = jax.random.split(key, 3)
    x = jax.random.normal(kx, (N, C, H, W), dtype=jnp.float32)

    # PyTorch default init is gamma=1, beta=0; perturb deterministically to
    # exercise the affine path.
    gamma = 1.0 + 0.05 * jax.random.normal(kg, (C,), dtype=jnp.float32)
    beta = 0.05 * jax.random.normal(kb, (C,), dtype=jnp.float32)

    out = batchnorm_relu(x, gamma, beta)
    out = jax.block_until_ready(out)

    ref = _reference(x, gamma, beta)
    assert out.shape == (N, C, H, W)
    assert jnp.max(jnp.abs(out - ref)) < 1e-4

    print("KERNEL_OK")
</pallas_src>

<mosaic_0001>
module attributes {stable_mosaic.version = 11 : i64} {
  func.func @_bn_relu_kernel(%arg0: i32, %arg1: memref<160x196xf32, #tpu.memory_space<vmem>>, %arg2: memref<160x1xf32, #tpu.memory_space<vmem>>, %arg3: memref<160x1xf32, #tpu.memory_space<vmem>>, %arg4: memref<160x196xf32, #tpu.memory_space<vmem>>) attributes {dimension_semantics = [#tpu.dimension_semantics<arbitrary>], iteration_bounds = array<i64: 1>, scalar_prefetch = 0 : i64, scratch_operands = 0 : i64, tpu.core_type = #tpu.core_type<tc>, window_params = [{pipeline_mode = #tpu.pipeline_mode<synchronous>, transform_indices = @transform_0, window_bounds = array<i64: 160, 196>}, {pipeline_mode = #tpu.pipeline_mode<synchronous>, transform_indices = @transform_1, window_bounds = array<i64: 160, 1>}, {pipeline_mode = #tpu.pipeline_mode<synchronous>, transform_indices = @transform_2, window_bounds = array<i64: 160, 1>}, {pipeline_mode = #tpu.pipeline_mode<synchronous>, transform_indices = @transform_3, window_bounds = array<i64: 160, 196>}]} {
    %c0_i32 = arith.constant 0 : i32
    %c32_i32 = arith.constant 32 : i32
    %0 = arith.muli %c0_i32, %c32_i32 : i32
    %1 = tpu.assume_multiple %0, 32 : i32
    %2 = arith.index_cast %1 : i32 to index
    %c0 = arith.constant 0 : index
    %3 = vector.load %arg1[%2, %c0] : memref<160x196xf32, #tpu.memory_space<vmem>>, vector<32x196xf32>
    %cst = arith.constant dense<0.000000e+00> : vector<32xf32>
    %4 = vector.multi_reduction <add>, %3, %cst [1] : vector<32x196xf32> to vector<32xf32>
    %5 = vector.shape_cast %4 : vector<32xf32> to vector<32x1xf32>
    %cst_0 = arith.constant 0.00510204071 : f32
    %6 = vector.broadcast %cst_0 : f32 to vector<32x1xf32>
    %7 = arith.mulf %5, %6 : vector<32x1xf32>
    %8 = vector.broadcast %7 : vector<32x1xf32> to vector<32x196xf32>
    %9 = arith.subf %3, %8 : vector<32x196xf32>
    %10 = arith.mulf %9, %9 : vector<32x196xf32>
    %cst_1 = arith.constant dense<0.000000e+00> : vector<32xf32>
    %11 = vector.multi_reduction <add>, %10, %cst_1 [1] : vector<32x196xf32> to vector<32xf32>
    %12 = vector.shape_cast %11 : vector<32xf32> to vector<32x1xf32>
    %cst_2 = arith.constant 0.00510204071 : f32
    %13 = vector.broadcast %cst_2 : f32 to vector<32x1xf32>
    %14 = arith.mulf %12, %13 : vector<32x1xf32>
    %cst_3 = arith.constant 9.99999974E-6 : f32
    %15 = vector.broadcast %cst_3 : f32 to vector<32x1xf32>
    %16 = arith.addf %14, %15 : vector<32x1xf32>
    %17 = math.rsqrt %16 : vector<32x1xf32>
    %18 = arith.index_cast %1 : i32 to index
    %c0_4 = arith.constant 0 : index
    %19 = vector.load %arg2[%18, %c0_4] : memref<160x1xf32, #tpu.memory_space<vmem>>, vector<32x1xf32>
    %20 = arith.index_cast %1 : i32 to index
    %c0_5 = arith.constant 0 : index
    %21 = vector.load %arg3[%20, %c0_5] : memref<160x1xf32, #tpu.memory_space<vmem>>, vector<32x1xf32>
    %22 = arith.mulf %19, %17 : vector<32x1xf32>
    %23 = vector.broadcast %22 : vector<32x1xf32> to vector<32x196xf32>
    %24 = arith.mulf %9, %23 : vector<32x196xf32>
    %25 = vector.broadcast %21 : vector<32x1xf32> to vector<32x196xf32>
    %26 = arith.addf %24, %25 : vector<32x196xf32>
    %cst_6 = arith.constant 0.000000e+00 : f32
    %27 = vector.broadcast %cst_6 : f32 to vector<32x196xf32>
    %28 = arith.maximumf %26, %27 : vector<32x196xf32>
    %29 = arith.index_cast %1 : i32 to index
    %c0_7 = arith.constant 0 : index
    %30 = vector.load %arg4[%29, %c0_7] : memref<160x196xf32, #tpu.memory_space<vmem>>, vector<32x196xf32>
    tpu.vector_store %arg4[%29, %c0_7], %28 {strides = array<i32>} : memref<160x196xf32, #tpu.memory_space<vmem>>, vector<32x196xf32>,
    %c1_i32 = arith.constant 1 : i32
    %c32_i32_8 = arith.constant 32 : i32
    %31 = arith.muli %c1_i32, %c32_i32_8 : i32
    %32 = tpu.assume_multiple %31, 32 : i32
    %33 = arith.index_cast %32 : i32 to index
    %c0_9 = arith.constant 0 : index
    %34 = vector.load %arg1[%33, %c0_9] : memref<160x196xf32, #tpu.memory_space<vmem>>, vector<32x196xf32>
    %cst_10 = arith.constant dense<0.000000e+00> : vector<32xf32>
    %35 = vector.multi_reduction <add>, %34, %cst_10 [1] : vector<32x196xf32> to vector<32xf32>
    %36 = vector.shape_cast %35 : vector<32xf32> to vector<32x1xf32>
    %cst_11 = arith.constant 0.00510204071 : f32
    %37 = vector.broadcast %cst_11 : f32 to vector<32x1xf32>
    %38 = arith.mulf %36, %37 : vector<32x1xf32>
    %39 = vector.broadcast %38 : vector<32x1xf32> to vector<32x196xf32>
    %40 = arith.subf %34, %39 : vector<32x196xf32>
    %41 = arith.mulf %40, %40 : vector<32x196xf32>
    %cst_12 = arith.constant dense<0.000000e+00> : vector<32xf32>
    %42 = vector.multi_reduction <add>, %41, %cst_12 [1] : vector<32x196xf32> to vector<32xf32>
    %43 = vector.shape_cast %42 : vector<32xf32> to vector<32x1xf32>
    %cst_13 = arith.constant 0.00510204071 : f32
    %44 = vector.broadcast %cst_13 : f32 to vector<32x1xf32>
    %45 = arith.mulf %43, %44 : vector<32x1xf32>
    %cst_14 = arith.constant 9.99999974E-6 : f32
    %46 = vector.broadcast %cst_14 : f32 to vector<32x1xf32>
    %47 = arith.addf %45, %46 : vector<32x1xf32>
    %48 = math.rsqrt %47 : vector<32x1xf32>
    %49 = arith.index_cast %32 : i32 to index
    %c0_15 = arith.constant 0 : index
    %50 = vector.load %arg2[%49, %c0_15] : memref<160x1xf32, #tpu.memory_space<vmem>>, vector<32x1xf32>
    %51 = arith.index_cast %32 : i32 to index
    %c0_16 = arith.constant 0 : index
    %52 = vector.load %arg3[%51, %c0_16] : memref<160x1xf32, #tpu.memory_space<vmem>>, vector<32x1xf32>
    %53 = arith.mulf %50, %48 : vector<32x1xf32>
    %54 = vector.broadcast %53 : vector<32x1xf32> to vector<32x196xf32>
    %55 = arith.mulf %40, %54 : vector<32x196xf32>
    %56 = vector.broadcast %52 : vector<32x1xf32> to vector<32x196xf32>
    %57 = arith.addf %55, %56 : vector<32x196xf32>
    %cst_17 = arith.constant 0.000000e+00 : f32
    %58 = vector.broadcast %cst_17 : f32 to vector<32x196xf32>
    %59 = arith.maximumf %57, %58 : vector<32x196xf32>
    %60 = arith.index_cast %32 : i32 to index
    %c0_18 = arith.constant 0 : index
    %61 = vector.load %arg4[%60, %c0_18] : memref<160x196xf32, #tpu.memory_space<vmem>>, vector<32x196xf32>
    tpu.vector_store %arg4[%60, %c0_18], %59 {strides = array<i32>} : memref<160x196xf32, #tpu.memory_space<vmem>>, vector<32x196xf32>,
    %c2_i32 = arith.constant 2 : i32
    %c32_i32_19 = arith.constant 32 : i32
    %62 = arith.muli %c2_i32, %c32_i32_19 : i32
    %63 = tpu.assume_multiple %62, 32 : i32
    %64 = arith.index_cast %63 : i32 to index
    %c0_20 = arith.constant 0 : index
    %65 = vector.load %arg1[%64, %c0_20] : memref<160x196xf32, #tpu.memory_space<vmem>>, vector<32x196xf32>
    %cst_21 = arith.constant dense<0.000000e+00> : vector<32xf32>
    %66 = vector.multi_reduction <add>, %65, %cst_21 [1] : vector<32x196xf32> to vector<32xf32>
    %67 = vector.shape_cast %66 : vector<32xf32> to vector<32x1xf32>
    %cst_22 = arith.constant 0.00510204071 : f32
    %68 = vector.broadcast %cst_22 : f32 to vector<32x1xf32>
    %69 = arith.mulf %67, %68 : vector<32x1xf32>
    %70 = vector.broadcast %69 : vector<32x1xf32> to vector<32x196xf32>
    %71 = arith.subf %65, %70 : vector<32x196xf32>
    %72 = arith.mulf %71, %71 : vector<32x196xf32>
    %cst_23 = arith.constant dense<0.000000e+00> : vector<32xf32>
    %73 = vector.multi_reduction <add>, %72, %cst_23 [1] : vector<32x196xf32> to vector<32xf32>
    %74 = vector.shape_cast %73 : vector<32xf32> to vector<32x1xf32>
    %cst_24 = arith.constant 0.00510204071 : f32
    %75 = vector.broadcast %cst_24 : f32 to vector<32x1xf32>
    %76 = arith.mulf %74, %75 : vector<32x1xf32>
    %cst_25 = arith.constant 9.99999974E-6 : f32
    %77 = vector.broadcast %cst_25 : f32 to vector<32x1xf32>
    %78 = arith.addf %76, %77 : vector<32x1xf32>
    %79 = math.rsqrt %78 : vector<32x1xf32>
    %80 = arith.index_cast %63 : i32 to index
    %c0_26 = arith.constant 0 : index
    %81 = vector.load %arg2[%80, %c0_26] : memref<160x1xf32, #tpu.memory_space<vmem>>, vector<32x1xf32>
    %82 = arith.index_cast %63 : i32 to index
    %c0_27 = arith.constant 0 : index
    %83 = vector.load %arg3[%82, %c0_27] : memref<160x1xf32, #tpu.memory_space<vmem>>, vector<32x1xf32>
    %84 = arith.mulf %81, %79 : vector<32x1xf32>
    %85 = vector.broadcast %84 : vector<32x1xf32> to vector<32x196xf32>
    %86 = arith.mulf %71, %85 : vector<32x196xf32>
    %87 = vector.broadcast %83 : vector<32x1xf32> to vector<32x196xf32>
    %88 = arith.addf %86, %87 : vector<32x196xf32>
    %cst_28 = arith.constant 0.000000e+00 : f32
    %89 = vector.broadcast %cst_28 : f32 to vector<32x196xf32>
    %90 = arith.maximumf %88, %89 : vector<32x196xf32>
    %91 = arith.index_cast %63 : i32 to index
    %c0_29 = arith.constant 0 : index
    %92 = vector.load %arg4[%91, %c0_29] : memref<160x196xf32, #tpu.memory_space<vmem>>, vector<32x196xf32>
    tpu.vector_store %arg4[%91, %c0_29], %90 {strides = array<i32>} : memref<160x196xf32, #tpu.memory_space<vmem>>, vector<32x196xf32>,
    %c3_i32 = arith.constant 3 : i32
    %c32_i32_30 = arith.constant 32 : i32
    %93 = arith.muli %c3_i32, %c32_i32_30 : i32
    %94 = tpu.assume_multiple %93, 32 : i32
    %95 = arith.index_cast %94 : i32 to index
    %c0_31 = arith.constant 0 : index
    %96 = vector.load %arg1[%95, %c0_31] : memref<160x196xf32, #tpu.memory_space<vmem>>, vector<32x196xf32>
    %cst_32 = arith.constant dense<0.000000e+00> : vector<32xf32>
    %97 = vector.multi_reduction <add>, %96, %cst_32 [1] : vector<32x196xf32> to vector<32xf32>
    %98 = vector.shape_cast %97 : vector<32xf32> to vector<32x1xf32>
    %cst_33 = arith.constant 0.00510204071 : f32
    %99 = vector.broadcast %cst_33 : f32 to vector<32x1xf32>
    %100 = arith.mulf %98, %99 : vector<32x1xf32>
    %101 = vector.broadcast %100 : vector<32x1xf32> to vector<32x196xf32>
    %102 = arith.subf %96, %101 : vector<32x196xf32>
    %103 = arith.mulf %102, %102 : vector<32x196xf32>
    %cst_34 = arith.constant dense<0.000000e+00> : vector<32xf32>
    %104 = vector.multi_reduction <add>, %103, %cst_34 [1] : vector<32x196xf32> to vector<32xf32>
    %105 = vector.shape_cast %104 : vector<32xf32> to vector<32x1xf32>
    %cst_35 = arith.constant 0.00510204071 : f32
    %106 = vector.broadcast %cst_35 : f32 to vector<32x1xf32>
    %107 = arith.mulf %105, %106 : vector<32x1xf32>
    %cst_36 = arith.constant 9.99999974E-6 : f32
    %108 = vector.broadcast %cst_36 : f32 to vector<32x1xf32>
    %109 = arith.addf %107, %108 : vector<32x1xf32>
    %110 = math.rsqrt %109 : vector<32x1xf32>
    %111 = arith.index_cast %94 : i32 to index
    %c0_37 = arith.constant 0 : index
    %112 = vector.load %arg2[%111, %c0_37] : memref<160x1xf32, #tpu.memory_space<vmem>>, vector<32x1xf32>
    %113 = arith.index_cast %94 : i32 to index
    %c0_38 = arith.constant 0 : index
    %114 = vector.load %arg3[%113, %c0_38] : memref<160x1xf32, #tpu.memory_space<vmem>>, vector<32x1xf32>
    %115 = arith.mulf %112, %110 : vector<32x1xf32>
    %116 = vector.broadcast %115 : vector<32x1xf32> to vector<32x196xf32>
    %117 = arith.mulf %102, %116 : vector<32x196xf32>
    %118 = vector.broadcast %114 : vector<32x1xf32> to vector<32x196xf32>
    %119 = arith.addf %117, %118 : vector<32x196xf32>
    %cst_39 = arith.constant 0.000000e+00 : f32
    %120 = vector.broadcast %cst_39 : f32 to vector<32x196xf32>
    %121 = arith.maximumf %119, %120 : vector<32x196xf32>
    %122 = arith.index_cast %94 : i32 to index
    %c0_40 = arith.constant 0 : index
    %123 = vector.load %arg4[%122, %c0_40] : memref<160x196xf32, #tpu.memory_space<vmem>>, vector<32x196xf32>
    tpu.vector_store %arg4[%122, %c0_40], %121 {strides = array<i32>} : memref<160x196xf32, #tpu.memory_space<vmem>>, vector<32x196xf32>,
    %c4_i32 = arith.constant 4 : i32
    %c32_i32_41 = arith.constant 32 : i32
    %124 = arith.muli %c4_i32, %c32_i32_41 : i32
    %125 = tpu.assume_multiple %124, 32 : i32
    %126 = arith.index_cast %125 : i32 to index
    %c0_42 = arith.constant 0 : index
    %127 = vector.load %arg1[%126, %c0_42] : memref<160x196xf32, #tpu.memory_space<vmem>>, vector<32x196xf32>
    %cst_43 = arith.constant dense<0.000000e+00> : vector<32xf32>
    %128 = vector.multi_reduction <add>, %127, %cst_43 [1] : vector<32x196xf32> to vector<32xf32>
    %129 = vector.shape_cast %128 : vector<32xf32> to vector<32x1xf32>
    %cst_44 = arith.constant 0.00510204071 : f32
    %130 = vector.broadcast %cst_44 : f32 to vector<32x1xf32>
    %131 = arith.mulf %129, %130 : vector<32x1xf32>
    %132 = vector.broadcast %131 : vector<32x1xf32> to vector<32x196xf32>
    %133 = arith.subf %127, %132 : vector<32x196xf32>
    %134 = arith.mulf %133, %133 : vector<32x196xf32>
    %cst_45 = arith.constant dense<0.000000e+00> : vector<32xf32>
    %135 = vector.multi_reduction <add>, %134, %cst_45 [1] : vector<32x196xf32> to vector<32xf32>
    %136 = vector.shape_cast %135 : vector<32xf32> to vector<32x1xf32>
    %cst_46 = arith.constant 0.00510204071 : f32
    %137 = vector.broadcast %cst_46 : f32 to vector<32x1xf32>
    %138 = arith.mulf %136, %137 : vector<32x1xf32>
    %cst_47 = arith.constant 9.99999974E-6 : f32
    %139 = vector.broadcast %cst_47 : f32 to vector<32x1xf32>
    %140 = arith.addf %138, %139 : vector<32x1xf32>
    %141 = math.rsqrt %140 : vector<32x1xf32>
    %142 = arith.index_cast %125 : i32 to index
    %c0_48 = arith.constant 0 : index
    %143 = vector.load %arg2[%142, %c0_48] : memref<160x1xf32, #tpu.memory_space<vmem>>, vector<32x1xf32>
    %144 = arith.index_cast %125 : i32 to index
    %c0_49 = arith.constant 0 : index
    %145 = vector.load %arg3[%144, %c0_49] : memref<160x1xf32, #tpu.memory_space<vmem>>, vector<32x1xf32>
    %146 = arith.mulf %143, %141 : vector<32x1xf32>
    %147 = vector.broadcast %146 : vector<32x1xf32> to vector<32x196xf32>
    %148 = arith.mulf %133, %147 : vector<32x196xf32>
    %149 = vector.broadcast %145 : vector<32x1xf32> to vector<32x196xf32>
    %150 = arith.addf %148, %149 : vector<32x196xf32>
    %cst_50 = arith.constant 0.000000e+00 : f32
    %151 = vector.broadcast %cst_50 : f32 to vector<32x196xf32>
    %152 = arith.maximumf %150, %151 : vector<32x196xf32>
    %153 = arith.index_cast %125 : i32 to index
    %c0_51 = arith.constant 0 : index
    %154 = vector.load %arg4[%153, %c0_51] : memref<160x196xf32, #tpu.memory_space<vmem>>, vector<32x196xf32>
    tpu.vector_store %arg4[%153, %c0_51], %152 {strides = array<i32>} : memref<160x196xf32, #tpu.memory_space<vmem>>, vector<32x196xf32>,
    %c5_i32 = arith.constant 5 : i32
    return
  }
  func.func @transform_0(%arg0: i32) -> (i32, i32) {
    %c0_i32 = arith.constant 0 : i32
    %c0_i32_0 = arith.constant 0 : i32
    %c0_i32_1 = arith.constant 0 : i32
    return %c0_i32, %c0_i32_0 : i32, i32
  }
  func.func @transform_1(%arg0: i32) -> (i32, i32) {
    %c0_i32 = arith.constant 0 : i32
    %c0_i32_0 = arith.constant 0 : i32
    %c0_i32_1 = arith.constant 0 : i32
    return %c0_i32, %c0_i32_0 : i32, i32
  }
  func.func @transform_2(%arg0: i32) -> (i32, i32) {
    %c0_i32 = arith.constant 0 : i32
    %c0_i32_0 = arith.constant 0 : i32
    %c0_i32_1 = arith.constant 0 : i32
    return %c0_i32, %c0_i32_0 : i32, i32
  }
  func.func @transform_3(%arg0: i32) -> (i32, i32) {
    %c0_i32 = arith.constant 0 : i32
    %c0_i32_0 = arith.constant 0 : i32
    %c0_i32_1 = arith.constant 0 : i32
    return %c0_i32, %c0_i32_0 : i32, i32
  }
}

</mosaic_0001>

<llo_original>
// kernel: tpu_custom_call.1
$region0: #{tpu_custom_call.1}
  #allocation0 [shape = 'u32[]', space=smem, size = 0x4, offset = 0x4, fixed_abs, tag = 'smem constant byte address 0x4 - core index']
  #allocation1 [shape = 'u32[72,128]{1,0:T(1,128)}', space=vmem, size = 0x9000, scoped, tag = 'internal scratch']
  %s0 = inlined_call_operand.vmem [shape: f32[160,196], index: 0, kind: input, shape index: {}]
  %s1 = inlined_call_operand.vmem [shape: f32[160,1], index: 1, kind: input, shape index: {}]
  %s2 = inlined_call_operand.vmem [shape: f32[160,1], index: 2, kind: input, shape index: {}]
  %s3 = inlined_call_operand.hbm [shape: f32[160,196], index: 3, kind: output, shape index: {}]
  %s4 = sld [smem:[#allocation0]]
  $region22: #{tpu_custom_call.1} parent=0
    _
  %s6 = ssub.s32 1, %s4
  %s7 = scalar_select 0, %s6, %s4
  $region1: #{tpu_custom_call.1} parent=0
    #allocation2 [shape = 'u8[163840]{0}', space=vmem, size = 0x28000, scoped, tag = 'output window, operand 0, single buffered']
    #allocation3 [shape = 's32[1]{0}', space=sflag, size = 0x4, scoped, tag = 'scoped memory for tpu_custom_call.1']
    %8 = vsyncpa [#allocation3], 0
    // Predicated region
    $region2: #{tpu_custom_call.1} parent=1 // pred_check
      _
    $region3: #{tpu_custom_call.1} parent=1 // pred_check_branch
      %10 = sbr.rel (0) target = $region5
    $region4: #{tpu_custom_call.1} parent=1 // pred_region
      _
    $region5: #{tpu_custom_call.1} parent=1 // pred_fallthru
      _
    // Predicated region
    $region6: #{tpu_custom_call.1} parent=1 // pred_check
      _
    $region7: #{tpu_custom_call.1} parent=1 // pred_check_branch
      %12 = sbr.rel (0) target = $region9
    $region8: #{tpu_custom_call.1} parent=1 // pred_region
      _
    $region9: #{tpu_custom_call.1} parent=1 // pred_fallthru
      _
    // Predicated region
    $region10: #{tpu_custom_call.1} parent=1 // pred_check
      _
    $region11: #{tpu_custom_call.1} parent=1 // pred_check_branch
      %14 = sbr.rel (0) target = $region13
    $region12: #{tpu_custom_call.1} parent=1 // pred_region
      _
    $region13: #{tpu_custom_call.1} parent=1 // pred_fallthru
      _
    %s15 = smul.u32 0, 2
    %s16 = smul.addr %s15, 8
    %s17 = scalar_lea.vmem %s0, %s16
    %v18 = vld [vmem:[%s17] sm:$0xff]
    %v19 = vld [vmem:[%s17 + $0x8] sm:$0xff]
    %v20 = vld [vmem:[%s17 + $0x10] sm:$0xff]
    %v21 = vld [vmem:[%s17 + $0x18] sm:$0xff]
    %v22 = vld [vmem:[%s17 + $0x20] sm:$0xff]
    %v23 = vld [vmem:[%s17 + $0x28] sm:$0xff]
    %v24 = vld [vmem:[%s17 + $0x30] sm:$0xff]
    %v25 = vld [vmem:[%s17 + $0x38] sm:$0xff]
    %vm26 = vcmask 556032
    %v27 = vsel %vm26, %v19, 0.0
    %v28 = vadd.f32 %v18, %v27
    %29 = vadd.xlane.f32.xlu0 %v28
    %v30 = vpop.xlane.xlu0 %29
    %v31 = vsel %vm26, %v21, 0.0
    %v32 = vadd.f32 %v20, %v31
    %33 = vadd.xlane.f32.xlu0 %v32
    %v34 = vpop.xlane.xlu0 %33
    %v35 = vsel %vm26, %v23, 0.0
    %v36 = vadd.f32 %v22, %v35
    %37 = vadd.xlane.f32.xlu0 %v36
    %v38 = vpop.xlane.xlu0 %37
    %v39 = vsel %vm26, %v25, 0.0
    %v40 = vadd.f32 %v24, %v39
    %41 = vadd.xlane.f32.xlu0 %v40
    %v42 = vpop.xlane.xlu0 %41
    %v43 = vmul.f32 %v30, 0.0051020407
    %v44 = vmul.f32 %v34, 0.0051020407
    %v45 = vmul.f32 %v38, 0.0051020407
    %v46 = vmul.f32 %v42, 0.0051020407
    %v47 = vsub.f32 %v18, %v43
    %v48 = vsub.f32 %v19, %v43
    %v49 = vsub.f32 %v20, %v44
    %v50 = vsub.f32 %v21, %v44
    %v51 = vsub.f32 %v22, %v45
    %v52 = vsub.f32 %v23, %v45
    %v53 = vsub.f32 %v24, %v46
    %v54 = vsub.f32 %v25, %v46
    %v55 = vmul.f32 %v47, %v47
    %v56 = vmul.f32 %v48, %v48
    %v57 = vmul.f32 %v49, %v49
    %v58 = vmul.f32 %v50, %v50
    %v59 = vmul.f32 %v51, %v51
    %v60 = vmul.f32 %v52, %v52
    %v61 = vmul.f32 %v53, %v53
    %v62 = vmul.f32 %v54, %v54
    %v63 = vsel %vm26, %v56, 0.0
    %v64 = vadd.f32 %v55, %v63
    %65 = vadd.xlane.f32.xlu0 %v64
    %v66 = vpop.xlane.xlu0 %65
    %v67 = vsel %vm26, %v58, 0.0
    %v68 = vadd.f32 %v57, %v67
    %69 = vadd.xlane.f32.xlu0 %v68
    %v70 = vpop.xlane.xlu0 %69
    %v71 = vsel %vm26, %v60, 0.0
    %v72 = vadd.f32 %v59, %v71
    %73 = vadd.xlane.f32.xlu0 %v72
    %v74 = vpop.xlane.xlu0 %73
    %v75 = vsel %vm26, %v62, 0.0
    %v76 = vadd.f32 %v61, %v75
    %77 = vadd.xlane.f32.xlu0 %v76
    %v78 = vpop.xlane.xlu0 %77
    %v79 = vmul.f32 %v66, 0.0051020407
    %v80 = vmul.f32 %v70, 0.0051020407
    %v81 = vmul.f32 %v74, 0.0051020407
    %v82 = vmul.f32 %v78, 0.0051020407
    %v83 = vadd.f32 %v79, 1e-05
    %v84 = vadd.f32 %v80, 1e-05
    %v85 = vadd.f32 %v81, 1e-05
    %v86 = vadd.f32 %v82, 1e-05
    %v87 = vrsqrt.pop %v83
    %v88 = vmul.f32 %v87, %v83
    %v89 = vmul.f32 %v88, %v87
    %v90 = vmul.f32 0.5, %v89
    %v91 = vsub.f32 1.5, %v90
    %v92 = vmul.f32 %v87, %v91
    %vm93 = vweird.f32 %v83
    %vm94 = vweird.f32 %v87
    %vm95 = vmor %vm93, %vm94
    %v96 = vsel %vm95, %v87, %v92
    %v97 = vrsqrt.pop %v84
    %v98 = vmul.f32 %v97, %v84
    %v99 = vmul.f32 %v98, %v97
    %v100 = vmul.f32 0.5, %v99
    %v101 = vsub.f32 1.5, %v100
    %v102 = vmul.f32 %v97, %v101
    %vm103 = vweird.f32 %v84
    %vm104 = vweird.f32 %v97
    %vm105 = vmor %vm103, %vm104
    %v106 = vsel %vm105, %v97, %v102
    %v107 = vrsqrt.pop %v85
    %v108 = vmul.f32 %v107, %v85
    %v109 = vmul.f32 %v108, %v107
    %v110 = vmul.f32 0.5, %v109
    %v111 = vsub.f32 1.5, %v110
    %v112 = vmul.f32 %v107, %v111
    %vm113 = vweird.f32 %v85
    %vm114 = vweird.f32 %v107
    %vm115 = vmor %vm113, %vm114
    %v116 = vsel %vm115, %v107, %v112
    %v117 = vrsqrt.pop %v86
    %v118 = vmul.f32 %v117, %v86
    %v119 = vmul.f32 %v118, %v117
    %v120 = vmul.f32 0.5, %v119
    %v121 = vsub.f32 1.5, %v120
    %v122 = vmul.f32 %v117, %v121
    %vm123 = vweird.f32 %v86
    %vm124 = vweird.f32 %v117
    %vm125 = vmor %vm123, %vm124
    %v126 = vsel %vm125, %v117, %v122
    %v127 = vld [vmem:[%s1] sm:$0xff]
    %v128 = vld [vmem:[%s1 + $0x8] sm:$0xff]
    %v129 = vld [vmem:[%s1 + $0x10] sm:$0xff]
    %v130 = vld [vmem:[%s1 + $0x18] sm:$0xff]
    %v131 = vld [vmem:[%s2] sm:$0xff]
    %v132 = vld [vmem:[%s2 + $0x8] sm:$0xff]
    %v133 = vld [vmem:[%s2 + $0x10] sm:$0xff]
    %v134 = vld [vmem:[%s2 + $0x18] sm:$0xff]
    %v135 = vmul.f32 %v127, %v96
    %v136 = vmul.f32 %v128, %v106
    %v137 = vmul.f32 %v129, %v116
    %v138 = vmul.f32 %v130, %v126
    %140 = vset.pattern.permute.xlu0 0
    %141 = vperm.xlu0 %140, %v135
    %v142 = vpop.permute.xlu0 %141
    %145 = vset.pattern.permute.xlu0 0
    %146 = vperm.xlu0 %145, %v136
    %v147 = vpop.permute.xlu0 %146
    %150 = vset.pattern.permute.xlu0 0
    %151 = vperm.xlu0 %150, %v137
    %v152 = vpop.permute.xlu0 %151
    %155 = vset.pattern.permute.xlu0 0
    %156 = vperm.xlu0 %155, %v138
    %v157 = vpop.permute.xlu0 %156
    %v159 = vmul.f32 %v47, %v142
    %v160 = vmul.f32 %v48, %v142
    %v161 = vmul.f32 %v49, %v147
    %v162 = vmul.f32 %v50, %v147
    %v163 = vmul.f32 %v51, %v152
    %v164 = vmul.f32 %v52, %v152
    %v165 = vmul.f32 %v53, %v157
    %v166 = vmul.f32 %v54, %v157
    %168 = vset.pattern.permute.xlu0 0
    %169 = vperm.xlu0 %168, %v131
    %v170 = vpop.permute.xlu0 %169
    %173 = vset.pattern.permute.xlu0 0
    %174 = vperm.xlu0 %173, %v132
    %v175 = vpop.permute.xlu0 %174
    %178 = vset.pattern.permute.xlu0 0
    %179 = vperm.xlu0 %178, %v133
    %v180 = vpop.permute.xlu0 %179
    %183 = vset.pattern.permute.xlu0 0
    %184 = vperm.xlu0 %183, %v134
    %v185 = vpop.permute.xlu0 %184
    %v187 = vadd.f32 %v159, %v170
    %v188 = vadd.f32 %v160, %v170
    %v189 = vadd.f32 %v161, %v175
    %v190 = vadd.f32 %v162, %v175
    %v191 = vadd.f32 %v163, %v180
    %v192 = vadd.f32 %v164, %v180
    %v193 = vadd.f32 %v165, %v185
    %v194 = vadd.f32 %v166, %v185
    %v195 = vmax.f32 %v187, 0.0
    %v196 = vmax.f32 %v188, 0.0
    %v197 = vmax.f32 %v189, 0.0
    %v198 = vmax.f32 %v190, 0.0
    %v199 = vmax.f32 %v191, 0.0
    %v200 = vmax.f32 %v192, 0.0
    %v201 = vmax.f32 %v193, 0.0
    %v202 = vmax.f32 %v194, 0.0
    %s203 = smul.addr %s15, 8
    %s204 = scalar_lea.vmem [#allocation2], %s203
    %205 = vst [vmem:[%s204] sm:$0xff] %v195
    %206 = vst.msk [vmem:[%s204 + $0x8] sm:$0xff] %vm26, %v196
    %207 = vst [vmem:[%s204 + $0x10] sm:$0xff] %v197
    %208 = vst.msk [vmem:[%s204 + $0x18] sm:$0xff] %vm26, %v198
    %209 = vst [vmem:[%s204 + $0x20] sm:$0xff] %v199
    %210 = vst.msk [vmem:[%s204 + $0x28] sm:$0xff] %vm26, %v200
    %211 = vst [vmem:[%s204 + $0x30] sm:$0xff] %v201
    %212 = vst.msk [vmem:[%s204 + $0x38] sm:$0xff] %vm26, %v202
    %s213 = smul.u32 4, 2
    %s214 = smul.addr %s213, 8
    %s215 = scalar_lea.vmem %s0, %s214
    %v216 = vld [vmem:[%s215] sm:$0xff]
    %v217 = vld [vmem:[%s215 + $0x8] sm:$0xff]
    %v218 = vld [vmem:[%s215 + $0x10] sm:$0xff]
    %v219 = vld [vmem:[%s215 + $0x18] sm:$0xff]
    %v220 = vld [vmem:[%s215 + $0x20] sm:$0xff]
    %v221 = vld [vmem:[%s215 + $0x28] sm:$0xff]
    %v222 = vld [vmem:[%s215 + $0x30] sm:$0xff]
    %v223 = vld [vmem:[%s215 + $0x38] sm:$0xff]
    %v224 = vsel %vm26, %v217, 0.0
    %v225 = vadd.f32 %v216, %v224
    %226 = vadd.xlane.f32.xlu0 %v225
    %v227 = vpop.xlane.xlu0 %226
    %v228 = vsel %vm26, %v219, 0.0
    %v229 = vadd.f32 %v218, %v228
    %230 = vadd.xlane.f32.xlu0 %v229
    %v231 = vpop.xlane.xlu0 %230
    %v232 = vsel %vm26, %v221, 0.0
    %v233 = vadd.f32 %v220, %v232
    %234 = vadd.xlane.f32.xlu0 %v233
    %v235 = vpop.xlane.xlu0 %234
    %v236 = vsel %vm26, %v223, 0.0
    %v237 = vadd.f32 %v222, %v236
    %238 = vadd.xlane.f32.xlu0 %v237
    %v239 = vpop.xlane.xlu0 %238
    %v240 = vmul.f32 %v227, 0.0051020407
    %v241 = vmul.f32 %v231, 0.0051020407
    %v242 = vmul.f32 %v235, 0.0051020407
    %v243 = vmul.f32 %v239, 0.0051020407
    %v244 = vsub.f32 %v216, %v240
    %v245 = vsub.f32 %v217, %v240
    %v246 = vsub.f32 %v218, %v241
    %v247 = vsub.f32 %v219, %v241
    %v248 = vsub.f32 %v220, %v242
    %v249 = vsub.f32 %v221, %v242
    %v250 = vsub.f32 %v222, %v243
    %v251 = vsub.f32 %v223, %v243
    %v252 = vmul.f32 %v244, %v244
    %v253 = vmul.f32 %v245, %v245
    %v254 = vmul.f32 %v246, %v246
    %v255 = vmul.f32 %v247, %v247
    %v256 = vmul.f32 %v248, %v248
    %v257 = vmul.f32 %v249, %v249
    %v258 = vmul.f32 %v250, %v250
    %v259 = vmul.f32 %v251, %v251
    %v260 = vsel %vm26, %v253, 0.0
    %v261 = vadd.f32 %v252, %v260
    %262 = vadd.xlane.f32.xlu0 %v261
    %v263 = vpop.xlane.xlu0 %262
    %v264 = vsel %vm26, %v255, 0.0
    %v265 = vadd.f32 %v254, %v264
    %266 = vadd.xlane.f32.xlu0 %v265
    %v267 = vpop.xlane.xlu0 %266
    %v268 = vsel %vm26, %v257, 0.0
    %v269 = vadd.f32 %v256, %v268
    %270 = vadd.xlane.f32.xlu0 %v269
    %v271 = vpop.xlane.xlu0 %270
    %v272 = vsel %vm26, %v259, 0.0
    %v273 = vadd.f32 %v258, %v272
    %274 = vadd.xlane.f32.xlu0 %v273
    %v275 = vpop.xlane.xlu0 %274
    %v276 = vmul.f32 %v263, 0.0051020407
    %v277 = vmul.f32 %v267, 0.0051020407
    %v278 = vmul.f32 %v271, 0.0051020407
    %v279 = vmul.f32 %v275, 0.0051020407
    %v280 = vadd.f32 %v276, 1e-05
    %v281 = vadd.f32 %v277, 1e-05
    %v282 = vadd.f32 %v278, 1e-05
    %v283 = vadd.f32 %v279, 1e-05
    %v284 = vrsqrt.pop %v280
    %v285 = vmul.f32 %v284, %v280
    %v286 = vmul.f32 %v285, %v284
    %v287 = vmul.f32 0.5, %v286
    %v288 = vsub.f32 1.5, %v287
    %v289 = vmul.f32 %v284, %v288
    %vm290 = vweird.f32 %v280
    %vm291 = vweird.f32 %v284
    %vm292 = vmor %vm290, %vm291
    %v293 = vsel %vm292, %v284, %v289
    %v294 = vrsqrt.pop %v281
    %v295 = vmul.f32 %v294, %v281
    %v296 = vmul.f32 %v295, %v294
    %v297 = vmul.f32 0.5, %v296
    %v298 = vsub.f32 1.5, %v297
    %v299 = vmul.f32 %v294, %v298
    %vm300 = vweird.f32 %v281
    %vm301 = vweird.f32 %v294
    %vm302 = vmor %vm300, %vm301
    %v303 = vsel %vm302, %v294, %v299
    %v304 = vrsqrt.pop %v282
    %v305 = vmul.f32 %v304, %v282
    %v306 = vmul.f32 %v305, %v304
    %v307 = vmul.f32 0.5, %v306
    %v308 = vsub.f32 1.5, %v307
    %v309 = vmul.f32 %v304, %v308
    %vm310 = vweird.f32 %v282
    %vm311 = vweird.f32 %v304
    %vm312 = vmor %vm310, %vm311
    %v313 = vsel %vm312, %v304, %v309
    %v314 = vrsqrt.pop %v283
    %v315 = vmul.f32 %v314, %v283
    %v316 = vmul.f32 %v315, %v314
    %v317 = vmul.f32 0.5, %v316
    %v318 = vsub.f32 1.5, %v317
    %v319 = vmul.f32 %v314, %v318
    %vm320 = vweird.f32 %v283
    %vm321 = vweird.f32 %v314
    %vm322 = vmor %vm320, %vm321
    %v323 = vsel %vm322, %v314, %v319
    %s324 = scalar_lea.vmem %s1, 32
    %v325 = vld [vmem:[%s324] sm:$0xff]
    %v326 = vld [vmem:[%s324 + $0x8] sm:$0xff]
    %v327 = vld [vmem:[%s324 + $0x10] sm:$0xff]
    %v328 = vld [vmem:[%s324 + $0x18] sm:$0xff]
    %s329 = scalar_lea.vmem %s2, 32
    %v330 = vld [vmem:[%s329] sm:$0xff]
    %v331 = vld [vmem:[%s329 + $0x8] sm:$0xff]
    %v332 = vld [vmem:[%s329 + $0x10] sm:$0xff]
    %v333 = vld [vmem:[%s329 + $0x18] sm:$0xff]
    %v334 = vmul.f32 %v325, %v293
    %v335 = vmul.f32 %v326, %v303
    %v336 = vmul.f32 %v327, %v313
    %v337 = vmul.f32 %v328, %v323
    %339 = vset.pattern.permute.xlu0 0
    %340 = vperm.xlu0 %339, %v334
    %v341 = vpop.permute.xlu0 %340
    %344 = vset.pattern.permute.xlu0 0
    %345 = vperm.xlu0 %344, %v335
    %v346 = vpop.permute.xlu0 %345
    %349 = vset.pattern.permute.xlu0 0
    %350 = vperm.xlu0 %349, %v336
    %v351 = vpop.permute.xlu0 %350
    %354 = vset.pattern.permute.xlu0 0
    %355 = vperm.xlu0 %354, %v337
    %v356 = vpop.permute.xlu0 %355
    %v358 = vmul.f32 %v244, %v341
    %v359 = vmul.f32 %v245, %v341
    %v360 = vmul.f32 %v246, %v346
    %v361 = vmul.f32 %v247, %v346
    %v362 = vmul.f32 %v248, %v351
    %v363 = vmul.f32 %v249, %v351
    %v364 = vmul.f32 %v250, %v356
    %v365 = vmul.f32 %v251, %v356
    %367 = vset.pattern.permute.xlu0 0
    %368 = vperm.xlu0 %367, %v330
    %v369 = vpop.permute.xlu0 %368
    %372 = vset.pattern.permute.xlu0 0
    %373 = vperm.xlu0 %372, %v331
    %v374 = vpop.permute.xlu0 %373
    %377 = vset.pattern.permute.xlu0 0
    %378 = vperm.xlu0 %377, %v332
    %v379 = vpop.permute.xlu0 %378
    %382 = vset.pattern.permute.xlu0 0
    %383 = vperm.xlu0 %382, %v333
    %v384 = vpop.permute.xlu0 %383
    %v386 = vadd.f32 %v358, %v369
    %v387 = vadd.f32 %v359, %v369
    %v388 = vadd.f32 %v360, %v374
    %v389 = vadd.f32 %v361, %v374
    %v390 = vadd.f32 %v362, %v379
    %v391 = vadd.f32 %v363, %v379
    %v392 = vadd.f32 %v364, %v384
    %v393 = vadd.f32 %v365, %v384
    %v394 = vmax.f32 %v386, 0.0
    %v395 = vmax.f32 %v387, 0.0
    %v396 = vmax.f32 %v388, 0.0
    %v397 = vmax.f32 %v389, 0.0
    %v398 = vmax.f32 %v390, 0.0
    %v399 = vmax.f32 %v391, 0.0
    %v400 = vmax.f32 %v392, 0.0
    %v401 = vmax.f32 %v393, 0.0
    %s402 = smul.addr %s213, 8
    %s403 = scalar_lea.vmem [#allocation2], %s402
    %404 = vst [vmem:[%s403] sm:$0xff] %v394
    %405 = vst.msk [vmem:[%s403 + $0x8] sm:$0xff] %vm26, %v395
    %406 = vst [vmem:[%s403 + $0x10] sm:$0xff] %v396
    %407 = vst.msk [vmem:[%s403 + $0x18] sm:$0xff] %vm26, %v397
    %408 = vst [vmem:[%s403 + $0x20] sm:$0xff] %v398
    %409 = vst.msk [vmem:[%s403 + $0x28] sm:$0xff] %vm26, %v399
    %410 = vst [vmem:[%s403 + $0x30] sm:$0xff] %v400
    %411 = vst.msk [vmem:[%s403 + $0x38] sm:$0xff] %vm26, %v401
    %s412 = smul.u32 8, 2
    %s413 = smul.addr %s412, 8
    %s414 = scalar_lea.vmem %s0, %s413
    %v415 = vld [vmem:[%s414] sm:$0xff]
    %v416 = vld [vmem:[%s414 + $0x8] sm:$0xff]
    %v417 = vld [vmem:[%s414 + $0x10] sm:$0xff]
    %v418 = vld [vmem:[%s414 + $0x18] sm:$0xff]
    %v419 = vld [vmem:[%s414 + $0x20] sm:$0xff]
    %v420 = vld [vmem:[%s414 + $0x28] sm:$0xff]
    %v421 = vld [vmem:[%s414 + $0x30] sm:$0xff]
    %v422 = vld [vmem:[%s414 + $0x38] sm:$0xff]
    %v423 = vsel %vm26, %v416, 0.0
    %v424 = vadd.f32 %v415, %v423
    %425 = vadd.xlane.f32.xlu0 %v424
    %v426 = vpop.xlane.xlu0 %425
    %v427 = vsel %vm26, %v418, 0.0
    %v428 = vadd.f32 %v417, %v427
    %429 = vadd.xlane.f32.xlu0 %v428
    %v430 = vpop.xlane.xlu0 %429
    %v431 = vsel %vm26, %v420, 0.0
    %v432 = vadd.f32 %v419, %v431
    %433 = vadd.xlane.f32.xlu0 %v432
    %v434 = vpop.xlane.xlu0 %433
    %v435 = vsel %vm26, %v422, 0.0
    %v436 = vadd.f32 %v421, %v435
    %437 = vadd.xlane.f32.xlu0 %v436
    %v438 = vpop.xlane.xlu0 %437
    %v439 = vmul.f32 %v426, 0.0051020407
    %v440 = vmul.f32 %v430, 0.0051020407
    %v441 = vmul.f32 %v434, 0.0051020407
    %v442 = vmul.f32 %v438, 0.0051020407
    %v443 = vsub.f32 %v415, %v439
    %v444 = vsub.f32 %v416, %v439
    %v445 = vsub.f32 %v417, %v440
    %v446 = vsub.f32 %v418, %v440
    %v447 = vsub.f32 %v419, %v441
    %v448 = vsub.f32 %v420, %v441
    %v449 = vsub.f32 %v421, %v442
    %v450 = vsub.f32 %v422, %v442
    %v451 = vmul.f32 %v443, %v443
    %v452 = vmul.f32 %v444, %v444
    %v453 = vmul.f32 %v445, %v445
    %v454 = vmul.f32 %v446, %v446
    %v455 = vmul.f32 %v447, %v447
    %v456 = vmul.f32 %v448, %v448
    %v457 = vmul.f32 %v449, %v449
    %v458 = vmul.f32 %v450, %v450
    %v459 = vsel %vm26, %v452, 0.0
    %v460 = vadd.f32 %v451, %v459
    %461 = vadd.xlane.f32.xlu0 %v460
    %v462 = vpop.xlane.xlu0 %461
    %v463 = vsel %vm26, %v454, 0.0
    %v464 = vadd.f32 %v453, %v463
    %465 = vadd.xlane.f32.xlu0 %v464
    %v466 = vpop.xlane.xlu0 %465
    %v467 = vsel %vm26, %v456, 0.0
    %v468 = vadd.f32 %v455, %v467
    %469 = vadd.xlane.f32.xlu0 %v468
    %v470 = vpop.xlane.xlu0 %469
    %v471 = vsel %vm26, %v458, 0.0
    %v472 = vadd.f32 %v457, %v471
    %473 = vadd.xlane.f32.xlu0 %v472
    %v474 = vpop.xlane.xlu0 %473
    %v475 = vmul.f32 %v462, 0.0051020407
    %v476 = vmul.f32 %v466, 0.0051020407
    %v477 = vmul.f32 %v470, 0.0051020407
    %v478 = vmul.f32 %v474, 0.0051020407
    %v479 = vadd.f32 %v475, 1e-05
    %v480 = vadd.f32 %v476, 1e-05
    %v481 = vadd.f32 %v477, 1e-05
    %v482 = vadd.f32 %v478, 1e-05
    %v483 = vrsqrt.pop %v479
    %v484 = vmul.f32 %v483, %v479
    %v485 = vmul.f32 %v484, %v483
    %v486 = vmul.f32 0.5, %v485
    %v487 = vsub.f32 1.5, %v486
    %v488 = vmul.f32 %v483, %v487
    %vm489 = vweird.f32 %v479
    %vm490 = vweird.f32 %v483
    %vm491 = vmor %vm489, %vm490
    %v492 = vsel %vm491, %v483, %v488
    %v493 = vrsqrt.pop %v480
    %v494 = vmul.f32 %v493, %v480
    %v495 = vmul.f32 %v494, %v493
    %v496 = vmul.f32 0.5, %v495
    %v497 = vsub.f32 1.5, %v496
    %v498 = vmul.f32 %v493, %v497
    %vm499 = vweird.f32 %v480
    %vm500 = vweird.f32 %v493
    %vm501 = vmor %vm499, %vm500
    %v502 = vsel %vm501, %v493, %v498
    %v503 = vrsqrt.pop %v481
    %v504 = vmul.f32 %v503, %v481
    %v505 = vmul.f32 %v504, %v503
    %v506 = vmul.f32 0.5, %v505
    %v507 = vsub.f32 1.5, %v506
    %v508 = vmul.f32 %v503, %v507
    %vm509 = vweird.f32 %v481
    %vm510 = vweird.f32 %v503
    %vm511 = vmor %vm509, %vm510
    %v512 = vsel %vm511, %v503, %v508
    %v513 = vrsqrt.pop %v482
    %v514 = vmul.f32 %v513, %v482
    %v515 = vmul.f32 %v514, %v513
    %v516 = vmul.f32 0.5, %v515
    %v517 = vsub.f32 1.5, %v516
    %v518 = vmul.f32 %v513, %v517
    %vm519 = vweird.f32 %v482
    %vm520 = vweird.f32 %v513
    %vm521 = vmor %vm519, %vm520
    %v522 = vsel %vm521, %v513, %v518
    %s523 = scalar_lea.vmem %s1, 64
    %v524 = vld [vmem:[%s523] sm:$0xff]
    %v525 = vld [vmem:[%s523 + $0x8] sm:$0xff]
    %v526 = vld [vmem:[%s523 + $0x10] sm:$0xff]
    %v527 = vld [vmem:[%s523 + $0x18] sm:$0xff]
    %s528 = scalar_lea.vmem %s2, 64
    %v529 = vld [vmem:[%s528] sm:$0xff]
    %v530 = vld [vmem:[%s528 + $0x8] sm:$0xff]
    %v531 = vld [vmem:[%s528 + $0x10] sm:$0xff]
    %v532 = vld [vmem:[%s528 + $0x18] sm:$0xff]
    %v533 = vmul.f32 %v524, %v492
    %v534 = vmul.f32 %v525, %v502
    %v535 = vmul.f32 %v526, %v512
    %v536 = vmul.f32 %v527, %v522
    %538 = vset.pattern.permute.xlu0 0
    %539 = vperm.xlu0 %538, %v533
    %v540 = vpop.permute.xlu0 %539
    %543 = vset.pattern.permute.xlu0 0
    %544 = vperm.xlu0 %543, %v534
    %v545 = vpop.permute.xlu0 %544
    %548 = vset.pattern.permute.xlu0 0
    %549 = vperm.xlu0 %548, %v535
    %v550 = vpop.permute.xlu0 %549
    %553 = vset.pattern.permute.xlu0 0
    %554 = vperm.xlu0 %553, %v536
    %v555 = vpop.permute.xlu0 %554
    %v557 = vmul.f32 %v443, %v540
    %v558 = vmul.f32 %v444, %v540
    %v559 = vmul.f32 %v445, %v545
    %v560 = vmul.f32 %v446, %v545
    %v561 = vmul.f32 %v447, %v550
    %v562 = vmul.f32 %v448, %v550
    %v563 = vmul.f32 %v449, %v555
    %v564 = vmul.f32 %v450, %v555
    %566 = vset.pattern.permute.xlu0 0
    %567 = vperm.xlu0 %566, %v529
    %v568 = vpop.permute.xlu0 %567
    %571 = vset.pattern.permute.xlu0 0
    %572 = vperm.xlu0 %571, %v530
    %v573 = vpop.permute.xlu0 %572
    %576 = vset.pattern.permute.xlu0 0
    %577 = vperm.xlu0 %576, %v531
    %v578 = vpop.permute.xlu0 %577
    %581 = vset.pattern.permute.xlu0 0
    %582 = vperm.xlu0 %581, %v532
    %v583 = vpop.permute.xlu0 %582
    %v585 = vadd.f32 %v557, %v568
    %v586 = vadd.f32 %v558, %v568
    %v587 = vadd.f32 %v559, %v573
    %v588 = vadd.f32 %v560, %v573
    %v589 = vadd.f32 %v561, %v578
    %v590 = vadd.f32 %v562, %v578
    %v591 = vadd.f32 %v563, %v583
    %v592 = vadd.f32 %v564, %v583
    %v593 = vmax.f32 %v585, 0.0
    %v594 = vmax.f32 %v586, 0.0
    %v595 = vmax.f32 %v587, 0.0
    %v596 = vmax.f32 %v588, 0.0
    %v597 = vmax.f32 %v589, 0.0
    %v598 = vmax.f32 %v590, 0.0
    %v599 = vmax.f32 %v591, 0.0
    %v600 = vmax.f32 %v592, 0.0
    %s601 = smul.addr %s412, 8
    %s602 = scalar_lea.vmem [#allocation2], %s601
    %603 = vst [vmem:[%s602] sm:$0xff] %v593
    %604 = vst.msk [vmem:[%s602 + $0x8] sm:$0xff] %vm26, %v594
    %605 = vst [vmem:[%s602 + $0x10] sm:$0xff] %v595
    %606 = vst.msk [vmem:[%s602 + $0x18] sm:$0xff] %vm26, %v596
    %607 = vst [vmem:[%s602 + $0x20] sm:$0xff] %v597
    %608 = vst.msk [vmem:[%s602 + $0x28] sm:$0xff] %vm26, %v598
    %609 = vst [vmem:[%s602 + $0x30] sm:$0xff] %v599
    %610 = vst.msk [vmem:[%s602 + $0x38] sm:$0xff] %vm26, %v600
    %s611 = smul.u32 12, 2
    %s612 = smul.addr %s611, 8
    %s613 = scalar_lea.vmem %s0, %s612
    %v614 = vld [vmem:[%s613] sm:$0xff]
    %v615 = vld [vmem:[%s613 + $0x8] sm:$0xff]
    %v616 = vld [vmem:[%s613 + $0x10] sm:$0xff]
    %v617 = vld [vmem:[%s613 + $0x18] sm:$0xff]
    %v618 = vld [vmem:[%s613 + $0x20] sm:$0xff]
    %v619 = vld [vmem:[%s613 + $0x28] sm:$0xff]
    %v620 = vld [vmem:[%s613 + $0x30] sm:$0xff]
    %v621 = vld [vmem:[%s613 + $0x38] sm:$0xff]
    %v622 = vsel %vm26, %v615, 0.0
    %v623 = vadd.f32 %v614, %v622
    %624 = vadd.xlane.f32.xlu0 %v623
    %v625 = vpop.xlane.xlu0 %624
    %v626 = vsel %vm26, %v617, 0.0
    %v627 = vadd.f32 %v616, %v626
    %628 = vadd.xlane.f32.xlu0 %v627
    %v629 = vpop.xlane.xlu0 %628
    %v630 = vsel %vm26, %v619, 0.0
    %v631 = vadd.f32 %v618, %v630
    %632 = vadd.xlane.f32.xlu0 %v631
    %v633 = vpop.xlane.xlu0 %632
    %v634 = vsel %vm26, %v621, 0.0
    %v635 = vadd.f32 %v620, %v634
    %636 = vadd.xlane.f32.xlu0 %v635
    %v637 = vpop.xlane.xlu0 %636
    %v638 = vmul.f32 %v625, 0.0051020407
    %v639 = vmul.f32 %v629, 0.0051020407
    %v640 = vmul.f32 %v633, 0.0051020407
    %v641 = vmul.f32 %v637, 0.0051020407
    %v642 = vsub.f32 %v614, %v638
    %v643 = vsub.f32 %v615, %v638
    %v644 = vsub.f32 %v616, %v639
    %v645 = vsub.f32 %v617, %v639
    %v646 = vsub.f32 %v618, %v640
    %v647 = vsub.f32 %v619, %v640
    %v648 = vsub.f32 %v620, %v641
    %v649 = vsub.f32 %v621, %v641
    %v650 = vmul.f32 %v642, %v642
    %v651 = vmul.f32 %v643, %v643
    %v652 = vmul.f32 %v644, %v644
    %v653 = vmul.f32 %v645, %v645
    %v654 = vmul.f32 %v646, %v646
    %v655 = vmul.f32 %v647, %v647
    %v656 = vmul.f32 %v648, %v648
    %v657 = vmul.f32 %v649, %v649
    %v658 = vsel %vm26, %v651, 0.0
    %v659 = vadd.f32 %v650, %v658
    %660 = vadd.xlane.f32.xlu0 %v659
    %v661 = vpop.xlane.xlu0 %660
    %v662 = vsel %vm26, %v653, 0.0
    %v663 = vadd.f32 %v652, %v662
    %664 = vadd.xlane.f32.xlu0 %v663
    %v665 = vpop.xlane.xlu0 %664
    %v666 = vsel %vm26, %v655, 0.0
    %v667 = vadd.f32 %v654, %v666
    %668 = vadd.xlane.f32.xlu0 %v667
    %v669 = vpop.xlane.xlu0 %668
    %v670 = vsel %vm26, %v657, 0.0
    %v671 = vadd.f32 %v656, %v670
    %672 = vadd.xlane.f32.xlu0 %v671
    %v673 = vpop.xlane.xlu0 %672
    %v674 = vmul.f32 %v661, 0.0051020407
    %v675 = vmul.f32 %v665, 0.0051020407
    %v676 = vmul.f32 %v669, 0.0051020407
    %v677 = vmul.f32 %v673, 0.0051020407
    %v678 = vadd.f32 %v674, 1e-05
    %v679 = vadd.f32 %v675, 1e-05
    %v680 = vadd.f32 %v676, 1e-05
    %v681 = vadd.f32 %v677, 1e-05
    %v682 = vrsqrt.pop %v678
    %v683 = vmul.f32 %v682, %v678
    %v684 = vmul.f32 %v683, %v682
    %v685 = vmul.f32 0.5, %v684
    %v686 = vsub.f32 1.5, %v685
    %v687 = vmul.f32 %v682, %v686
    %vm688 = vweird.f32 %v678
    %vm689 = vweird.f32 %v682
    %vm690 = vmor %vm688, %vm689
    %v691 = vsel %vm690, %v682, %v687
    %v692 = vrsqrt.pop %v679
    %v693 = vmul.f32 %v692, %v679
    %v694 = vmul.f32 %v693, %v692
    %v695 = vmul.f32 0.5, %v694
    %v696 = vsub.f32 1.5, %v695
    %v697 = vmul.f32 %v692, %v696
    %vm698 = vweird.f32 %v679
    %vm699 = vweird.f32 %v692
    %vm700 = vmor %vm698, %vm699
    %v701 = vsel %vm700, %v692, %v697
    %v702 = vrsqrt.pop %v680
    %v703 = vmul.f32 %v702, %v680
    %v704 = vmul.f32 %v703, %v702
    %v705 = vmul.f32 0.5, %v704
    %v706 = vsub.f32 1.5, %v705
    %v707 = vmul.f32 %v702, %v706
    %vm708 = vweird.f32 %v680
    %vm709 = vweird.f32 %v702
    %vm710 = vmor %vm708, %vm709
    %v711 = vsel %vm710, %v702, %v707
    %v712 = vrsqrt.pop %v681
    %v713 = vmul.f32 %v712, %v681
    %v714 = vmul.f32 %v713, %v712
    %v715 = vmul.f32 0.5, %v714
    %v716 = vsub.f32 1.5, %v715
    %v717 = vmul.f32 %v712, %v716
    %vm718 = vweird.f32 %v681
    %vm719 = vweird.f32 %v712
    %vm720 = vmor %vm718, %vm719
    %v721 = vsel %vm720, %v712, %v717
    %s722 = scalar_lea.vmem %s1, 96
    %v723 = vld [vmem:[%s722] sm:$0xff]
    %v724 = vld [vmem:[%s722 + $0x8] sm:$0xff]
    %v725 = vld [vmem:[%s722 + $0x10] sm:$0xff]
    %v726 = vld [vmem:[%s722 + $0x18] sm:$0xff]
    %s727 = scalar_lea.vmem %s2, 96
    %v728 = vld [vmem:[%s727] sm:$0xff]
    %v729 = vld [vmem:[%s727 + $0x8] sm:$0xff]
    %v730 = vld [vmem:[%s727 + $0x10] sm:$0xff]
    %v731 = vld [vmem:[%s727 + $0x18] sm:$0xff]
    %v732 = vmul.f32 %v723, %v691
    %v733 = vmul.f32 %v724, %v701
    %v734 = vmul.f32 %v725, %v711
    %v735 = vmul.f32 %v726, %v721
    %737 = vset.pattern.permute.xlu0 0
    %738 = vperm.xlu0 %737, %v732
    %v739 = vpop.permute.xlu0 %738
    %742 = vset.pattern.permute.xlu0 0
    %743 = vperm.xlu0 %742, %v733
    %v744 = vpop.permute.xlu0 %743
    %747 = vset.pattern.permute.xlu0 0
    %748 = vperm.xlu0 %747, %v734
    %v749 = vpop.permute.xlu0 %748
    %752 = vset.pattern.permute.xlu0 0
    %753 = vperm.xlu0 %752, %v735
    %v754 = vpop.permute.xlu0 %753
    %v756 = vmul.f32 %v642, %v739
    %v757 = vmul.f32 %v643, %v739
    %v758 = vmul.f32 %v644, %v744
    %v759 = vmul.f32 %v645, %v744
    %v760 = vmul.f32 %v646, %v749
    %v761 = vmul.f32 %v647, %v749
    %v762 = vmul.f32 %v648, %v754
    %v763 = vmul.f32 %v649, %v754
    %765 = vset.pattern.permute.xlu0 0
    %766 = vperm.xlu0 %765, %v728
    %v767 = vpop.permute.xlu0 %766
    %770 = vset.pattern.permute.xlu0 0
    %771 = vperm.xlu0 %770, %v729
    %v772 = vpop.permute.xlu0 %771
    %775 = vset.pattern.permute.xlu0 0
    %776 = vperm.xlu0 %775, %v730
    %v777 = vpop.permute.xlu0 %776
    %780 = vset.pattern.permute.xlu0 0
    %781 = vperm.xlu0 %780, %v731
    %v782 = vpop.permute.xlu0 %781
    %v784 = vadd.f32 %v756, %v767
    %v785 = vadd.f32 %v757, %v767
    %v786 = vadd.f32 %v758, %v772
    %v787 = vadd.f32 %v759, %v772
    %v788 = vadd.f32 %v760, %v777
    %v789 = vadd.f32 %v761, %v777
    %v790 = vadd.f32 %v762, %v782
    %v791 = vadd.f32 %v763, %v782
    %v792 = vmax.f32 %v784, 0.0
    %v793 = vmax.f32 %v785, 0.0
    %v794 = vmax.f32 %v786, 0.0
    %v795 = vmax.f32 %v787, 0.0
    %v796 = vmax.f32 %v788, 0.0
    %v797 = vmax.f32 %v789, 0.0
    %v798 = vmax.f32 %v790, 0.0
    %v799 = vmax.f32 %v791, 0.0
    %s800 = smul.addr %s611, 8
    %s801 = scalar_lea.vmem [#allocation2], %s800
    %802 = vst [vmem:[%s801] sm:$0xff] %v792
    %803 = vst.msk [vmem:[%s801 + $0x8] sm:$0xff] %vm26, %v793
    %804 = vst [vmem:[%s801 + $0x10] sm:$0xff] %v794
    %805 = vst.msk [vmem:[%s801 + $0x18] sm:$0xff] %vm26, %v795
    %806 = vst [vmem:[%s801 + $0x20] sm:$0xff] %v796
    %807 = vst.msk [vmem:[%s801 + $0x28] sm:$0xff] %vm26, %v797
    %808 = vst [vmem:[%s801 + $0x30] sm:$0xff] %v798
    %809 = vst.msk [vmem:[%s801 + $0x38] sm:$0xff] %vm26, %v799
    %s810 = smul.u32 16, 2
    %s811 = smul.addr %s810, 8
    %s812 = scalar_lea.vmem %s0, %s811
    %v813 = vld [vmem:[%s812] sm:$0xff]
    %v814 = vld [vmem:[%s812 + $0x8] sm:$0xff]
    %v815 = vld [vmem:[%s812 + $0x10] sm:$0xff]
    %v816 = vld [vmem:[%s812 + $0x18] sm:$0xff]
    %v817 = vld [vmem:[%s812 + $0x20] sm:$0xff]
    %v818 = vld [vmem:[%s812 + $0x28] sm:$0xff]
    %v819 = vld [vmem:[%s812 + $0x30] sm:$0xff]
    %v820 = vld [vmem:[%s812 + $0x38] sm:$0xff]
    %v821 = vsel %vm26, %v814, 0.0
    %v822 = vadd.f32 %v813, %v821
    %823 = vadd.xlane.f32.xlu0 %v822
    %v824 = vpop.xlane.xlu0 %823
    %v825 = vsel %vm26, %v816, 0.0
    %v826 = vadd.f32 %v815, %v825
    %827 = vadd.xlane.f32.xlu0 %v826
    %v828 = vpop.xlane.xlu0 %827
    %v829 = vsel %vm26, %v818, 0.0
    %v830 = vadd.f32 %v817, %v829
    %831 = vadd.xlane.f32.xlu0 %v830
    %v832 = vpop.xlane.xlu0 %831
    %v833 = vsel %vm26, %v820, 0.0
    %v834 = vadd.f32 %v819, %v833
    %835 = vadd.xlane.f32.xlu0 %v834
    %v836 = vpop.xlane.xlu0 %835
    %v837 = vmul.f32 %v824, 0.0051020407
    %v838 = vmul.f32 %v828, 0.0051020407
    %v839 = vmul.f32 %v832, 0.0051020407
    %v840 = vmul.f32 %v836, 0.0051020407
    %v841 = vsub.f32 %v813, %v837
    %v842 = vsub.f32 %v814, %v837
    %v843 = vsub.f32 %v815, %v838
    %v844 = vsub.f32 %v816, %v838
    %v845 = vsub.f32 %v817, %v839
    %v846 = vsub.f32 %v818, %v839
    %v847 = vsub.f32 %v819, %v840
    %v848 = vsub.f32 %v820, %v840
    %v849 = vmul.f32 %v841, %v841
    %v850 = vmul.f32 %v842, %v842
    %v851 = vmul.f32 %v843, %v843
    %v852 = vmul.f32 %v844, %v844
    %v853 = vmul.f32 %v845, %v845
    %v854 = vmul.f32 %v846, %v846
    %v855 = vmul.f32 %v847, %v847
    %v856 = vmul.f32 %v848, %v848
    %v857 = vsel %vm26, %v850, 0.0
    %v858 = vadd.f32 %v849, %v857
    %859 = vadd.xlane.f32.xlu0 %v858
    %v860 = vpop.xlane.xlu0 %859
    %v861 = vsel %vm26, %v852, 0.0
    %v862 = vadd.f32 %v851, %v861
    %863 = vadd.xlane.f32.xlu0 %v862
    %v864 = vpop.xlane.xlu0 %863
    %v865 = vsel %vm26, %v854, 0.0
    %v866 = vadd.f32 %v853, %v865
    %867 = vadd.xlane.f32.xlu0 %v866
    %v868 = vpop.xlane.xlu0 %867
    %v869 = vsel %vm26, %v856, 0.0
    %v870 = vadd.f32 %v855, %v869
    %871 = vadd.xlane.f32.xlu0 %v870
    %v872 = vpop.xlane.xlu0 %871
    %v873 = vmul.f32 %v860, 0.0051020407
    %v874 = vmul.f32 %v864, 0.0051020407
    %v875 = vmul.f32 %v868, 0.0051020407
    %v876 = vmul.f32 %v872, 0.0051020407
    %v877 = vadd.f32 %v873, 1e-05
    %v878 = vadd.f32 %v874, 1e-05
    %v879 = vadd.f32 %v875, 1e-05
    %v880 = vadd.f32 %v876, 1e-05
    %v881 = vrsqrt.pop %v877
    %v882 = vmul.f32 %v881, %v877
    %v883 = vmul.f32 %v882, %v881
    %v884 = vmul.f32 0.5, %v883
    %v885 = vsub.f32 1.5, %v884
    %v886 = vmul.f32 %v881, %v885
    %vm887 = vweird.f32 %v877
    %vm888 = vweird.f32 %v881
    %vm889 = vmor %vm887, %vm888
    %v890 = vsel %vm889, %v881, %v886
    %v891 = vrsqrt.pop %v878
    %v892 = vmul.f32 %v891, %v878
    %v893 = vmul.f32 %v892, %v891
    %v894 = vmul.f32 0.5, %v893
    %v895 = vsub.f32 1.5, %v894
    %v896 = vmul.f32 %v891, %v895
    %vm897 = vweird.f32 %v878
    %vm898 = vweird.f32 %v891
    %vm899 = vmor %vm897, %vm898
    %v900 = vsel %vm899, %v891, %v896
    %v901 = vrsqrt.pop %v879
    %v902 = vmul.f32 %v901, %v879
    %v903 = vmul.f32 %v902, %v901
    %v904 = vmul.f32 0.5, %v903
    %v905 = vsub.f32 1.5, %v904
    %v906 = vmul.f32 %v901, %v905
    %vm907 = vweird.f32 %v879
    %vm908 = vweird.f32 %v901
    %vm909 = vmor %vm907, %vm908
    %v910 = vsel %vm909, %v901, %v906
    %v911 = vrsqrt.pop %v880
    %v912 = vmul.f32 %v911, %v880
    %v913 = vmul.f32 %v912, %v911
    %v914 = vmul.f32 0.5, %v913
    %v915 = vsub.f32 1.5, %v914
    %v916 = vmul.f32 %v911, %v915
    %vm917 = vweird.f32 %v880
    %vm918 = vweird.f32 %v911
    %vm919 = vmor %vm917, %vm918
    %v920 = vsel %vm919, %v911, %v916
    %s921 = scalar_lea.vmem %s1, 128
    %v922 = vld [vmem:[%s921] sm:$0xff]
    %v923 = vld [vmem:[%s921 + $0x8] sm:$0xff]
    %v924 = vld [vmem:[%s921 + $0x10] sm:$0xff]
    %v925 = vld [vmem:[%s921 + $0x18] sm:$0xff]
    %s926 = scalar_lea.vmem %s2, 128
    %v927 = vld [vmem:[%s926] sm:$0xff]
    %v928 = vld [vmem:[%s926 + $0x8] sm:$0xff]
    %v929 = vld [vmem:[%s926 + $0x10] sm:$0xff]
    %v930 = vld [vmem:[%s926 + $0x18] sm:$0xff]
    %v931 = vmul.f32 %v922, %v890
    %v932 = vmul.f32 %v923, %v900
    %v933 = vmul.f32 %v924, %v910
    %v934 = vmul.f32 %v925, %v920
    %936 = vset.pattern.permute.xlu0 0
    %937 = vperm.xlu0 %936, %v931
    %v938 = vpop.permute.xlu0 %937
    %941 = vset.pattern.permute.xlu0 0
    %942 = vperm.xlu0 %941, %v932
    %v943 = vpop.permute.xlu0 %942
    %946 = vset.pattern.permute.xlu0 0
    %947 = vperm.xlu0 %946, %v933
    %v948 = vpop.permute.xlu0 %947
    %951 = vset.pattern.permute.xlu0 0
    %952 = vperm.xlu0 %951, %v934
    %v953 = vpop.permute.xlu0 %952
    %v955 = vmul.f32 %v841, %v938
    %v956 = vmul.f32 %v842, %v938
    %v957 = vmul.f32 %v843, %v943
    %v958 = vmul.f32 %v844, %v943
    %v959 = vmul.f32 %v845, %v948
    %v960 = vmul.f32 %v846, %v948
    %v961 = vmul.f32 %v847, %v953
    %v962 = vmul.f32 %v848, %v953
    %964 = vset.pattern.permute.xlu0 0
    %965 = vperm.xlu0 %964, %v927
    %v966 = vpop.permute.xlu0 %965
    %969 = vset.pattern.permute.xlu0 0
    %970 = vperm.xlu0 %969, %v928
    %v971 = vpop.permute.xlu0 %970
    %974 = vset.pattern.permute.xlu0 0
    %975 = vperm.xlu0 %974, %v929
    %v976 = vpop.permute.xlu0 %975
    %979 = vset.pattern.permute.xlu0 0
    %980 = vperm.xlu0 %979, %v930
    %v981 = vpop.permute.xlu0 %980
    %v983 = vadd.f32 %v955, %v966
    %v984 = vadd.f32 %v956, %v966
    %v985 = vadd.f32 %v957, %v971
    %v986 = vadd.f32 %v958, %v971
    %v987 = vadd.f32 %v959, %v976
    %v988 = vadd.f32 %v960, %v976
    %v989 = vadd.f32 %v961, %v981
    %v990 = vadd.f32 %v962, %v981
    %v991 = vmax.f32 %v983, 0.0
    %v992 = vmax.f32 %v984, 0.0
    %v993 = vmax.f32 %v985, 0.0
    %v994 = vmax.f32 %v986, 0.0
    %v995 = vmax.f32 %v987, 0.0
    %v996 = vmax.f32 %v988, 0.0
    %v997 = vmax.f32 %v989, 0.0
    %v998 = vmax.f32 %v990, 0.0
    %s999 = smul.addr %s810, 8
    %s1000 = scalar_lea.vmem [#allocation2], %s999
    %1001 = vst [vmem:[%s1000] sm:$0xff] %v991
    %1002 = vst.msk [vmem:[%s1000 + $0x8] sm:$0xff] %vm26, %v992
    %1003 = vst [vmem:[%s1000 + $0x10] sm:$0xff] %v993
    %1004 = vst.msk [vmem:[%s1000 + $0x18] sm:$0xff] %vm26, %v994
    %1005 = vst [vmem:[%s1000 + $0x20] sm:$0xff] %v995
    %1006 = vst.msk [vmem:[%s1000 + $0x28] sm:$0xff] %vm26, %v996
    %1007 = vst [vmem:[%s1000 + $0x30] sm:$0xff] %v997
    %1008 = vst.msk [vmem:[%s1000 + $0x38] sm:$0xff] %vm26, %v998
    // Predicated region
    $region14: #{tpu_custom_call.1} parent=1 // pred_check
      _
    $region15: #{tpu_custom_call.1} parent=1 // pred_check_branch
      %1010 = sbr.rel (0) target = $region17
    $region16: #{tpu_custom_call.1} parent=1 // pred_region
      %1012 = vsyncadd [#allocation3], 0
      %s1013 = sshll.u32 [#allocation2], 4
      %s1014 = int_to_ptr.vmem [resolvable:$true] %s1013
      %s1015 = sshll.u32 %s3, 4
      %s1016 = int_to_ptr.hbm [resolvable:$true] %s1015
      %1021 = dma.vmem_to_hbm [thread:$0]  %s1014, 5120, %s1016, [#allocation3], 256, 256, 16
    $region17: #{tpu_custom_call.1} parent=1 // pred_fallthru
      _
    // Predicated region
    $region18: #{tpu_custom_call.1} parent=1 // pred_check
      _
    $region19: #{tpu_custom_call.1} parent=1 // pred_check_branch
      %1023 = sbr.rel (0) target = $region21
    $region20: #{tpu_custom_call.1} parent=1 // pred_region
      %1025 = dma.done [#allocation3], 5120
    $region21: #{tpu_custom_call.1} parent=1 // pred_fallthru
      _
    %1026 = vsyncpa [#allocation3], 1

</llo_original>
